<compile_context>
chip_gen: v6e
topology: v6e:2x2x1
jax: 0.10.0
libtpu: 0.0.40
codegen_flags: <defaults>
</compile_context>

<pallas_src>
import jax
import jax.numpy as jnp
from jax.experimental import pallas as pl
from jax.experimental.pallas import tpu as pltpu

W_BITS = 8
A_BITS = 4

IN_FEATURES = 28 * 28          # hardcoded in the module (MNIST)
IN_PAD = 896                   # 7 * 128, lane-aligned
HIDDEN = 256                   # module takes hidden_size as a parameter; small value here
OUT_FEATURES = 10
OUT_PAD = 128                  # lane-dense output slab; sliced back to 10 in the wrapper
BATCH = 32
MAX_TILE_B = 512               # biggest batch tile; still < 1.5 MiB VMEM working set

A_QMAX = float(2 ** (A_BITS - 1) - 1)
W_QMAX = float(2 ** (W_BITS - 1) - 1)


def _round_up(n, m):
    return ((n + m - 1) // m) * m


def _act_quant(v, qmax, nonneg):
    """Per-tensor symmetric fake-quant of activations.

    Returns (integer levels, f32) and (dequant scale, (1,1) f32).
    The inverse scale is an exact (1,1) divide (single vreg), so levels match round(v/s);
    post-ReLU tensors (nonneg=True) skip the abs pass and use a 0 lower clip bound.
    """
    m = jnp.max(v if nonneg else jnp.abs(v), keepdims=True)      # (1, 1)
    m = jnp.maximum(m, 1e-8)
    inv_scale = qmax / m                                         # exact, (1,1) only
    scale = m * (1.0 / qmax)                                     # dequant scale, (1,1)
    lo = 0.0 if nonneg else -qmax
    q = jnp.clip(jnp.round(v * inv_scale), lo, qmax)             # integer levels, f32
    return q, scale


def qnn_kernel(x_ref, w1_ref, b1_ref, w2_ref, b2_ref, w3_ref, b3_ref, wsc_ref, o_ref):
    # wN_ref: pre-quantized integer weight levels, int8, [in, out] (resident across tiles)
    # wsc_ref: SMEM f32[3] per-tensor weight scales
    x = x_ref[...].astype(jnp.float32)                           # bf16 -> f32 (exact widen)

    # --- L1: QLinear(784(pad 896) -> hidden) ---
    qx, sx = _act_quant(x, A_QMAX, nonneg=False)
    h = jnp.dot(qx.astype(jnp.bfloat16), w1_ref[...].astype(jnp.bfloat16),
                preferred_element_type=jnp.float32)
    d1 = sx * wsc_ref[0]                                         # single (1,1) dequant scalar
    h = h * d1 + b1_ref[...]
    h = jnp.maximum(h, 0.0)                                      # ReLU

    # --- L2: QLinear(hidden -> hidden) ---
    qh, sh = _act_quant(h, A_QMAX, nonneg=True)
    h = jnp.dot(qh.astype(jnp.bfloat16), w2_ref[...].astype(jnp.bfloat16),
                preferred_element_type=jnp.float32)
    d2 = sh * wsc_ref[1]
    h = h * d2 + b2_ref[...]
    h = jnp.maximum(h, 0.0)                                      # ReLU

    # --- L3: QLinear(hidden -> 10(pad 128)) ---
    qh, sh = _act_quant(h, A_QMAX, nonneg=True)
    o = jnp.dot(qh.astype(jnp.bfloat16), w3_ref[...].astype(jnp.bfloat16),
                preferred_element_type=jnp.float32)
    d3 = sh * wsc_ref[2]
    o_ref[...] = o * d3 + b3_ref[...]


def prepare_params(params):
    """One-time weight prep (do NOT call per forward): fake-quant each weight to integer
    levels, transpose [out,in] -> [in,out], zero-pad to lane-aligned shapes, store levels as
    int8 (exact for |q| <= 127, halves weight HBM bytes), and collect per-tensor f32 scales
    for SMEM."""
    def prep(w, in_pad=None, out_pad=None):
        m = jnp.maximum(jnp.max(jnp.abs(w)), 1e-8)
        scale = m / W_QMAX
        q = jnp.clip(jnp.round(w / scale), -W_QMAX, W_QMAX)      # integer levels, f32
        q = q.T                                                   # [in, out]
        if in_pad is not None:
            q = jnp.pad(q, ((0, in_pad - q.shape[0]), (0, 0)))
        if out_pad is not None:
            q = jnp.pad(q, ((0, 0), (0, out_pad - q.shape[1])))
        return q.astype(jnp.int8), scale

    qw1, s1 = prep(params["w1"], in_pad=IN_PAD)
    qw2, s2 = prep(params["w2"])
    qw3, s3 = prep(params["w3"], out_pad=OUT_PAD)
    b1 = params["b1"].reshape(1, -1).astype(jnp.float32)
    b2 = params["b2"].reshape(1, -1).astype(jnp.float32)
    b3 = jnp.pad(params["b3"], (0, OUT_PAD - OUT_FEATURES)).reshape(1, -1).astype(jnp.float32)
    wscales = jnp.stack([s1, s2, s3]).astype(jnp.float32)
    return {"qw1": qw1, "b1": b1, "qw2": qw2, "b2": b2, "qw3": qw3, "b3": b3,
            "wscales": wscales}


def quantized_nn_forward(x, prepared, *, max_tile_b=MAX_TILE_B):
    """x: [B, 784] float32. prepared: output of prepare_params (cached weights)."""
    B = x.shape[0]
    # Single grid step for small batches (B <= max_tile_b); otherwise big MXU-filling tiles.
    tile_b = min(_round_up(B, 16), max_tile_b)
    b_pad = _round_up(B, tile_b)
    # Zero-pad batch/features (inert) and cast to bf16 to halve input DMA; the 4-bit activation
    # quant makes bf16 rounding of the source numerically irrelevant.
    x = jnp.pad(x, ((0, b_pad - B), (0, IN_PAD - x.shape[1]))).astype(jnp.bfloat16)
    grid = (b_pad // tile_b,)

    out = pl.pallas_call(
        qnn_kernel,
        out_shape=jax.ShapeDtypeStruct((b_pad, OUT_PAD), jnp.float32),
        grid_spec=pltpu.PrefetchScalarGridSpec(
            num_scalar_prefetch=0,
            grid=grid,
            in_specs=[
                pl.BlockSpec((tile_b, IN_PAD), lambda i: (i, 0)),        # x batch tile (bf16)
                pl.BlockSpec((IN_PAD, HIDDEN), lambda i: (0, 0)),        # qW1 int8 (resident)
                pl.BlockSpec((1, HIDDEN), lambda i: (0, 0)),             # b1
                pl.BlockSpec((HIDDEN, HIDDEN), lambda i: (0, 0)),        # qW2 int8 (resident)
                pl.BlockSpec((1, HIDDEN), lambda i: (0, 0)),             # b2
                pl.BlockSpec((HIDDEN, OUT_PAD), lambda i: (0, 0)),       # qW3 int8 (resident)
                pl.BlockSpec((1, OUT_PAD), lambda i: (0, 0)),            # b3
                pl.BlockSpec(memory_space=pltpu.MemorySpace.SMEM),       # weight scales
            ],
            out_specs=pl.BlockSpec((tile_b, OUT_PAD), lambda i: (i, 0)),
        ),
        compiler_params=pltpu.CompilerParams(
            # Batch tiles are independent; with grid=(1,) at small batch this is a no-op, and
            # for large batches each tile carries >=128 rows so a v7x core split is worthwhile.
            dimension_semantics=("parallel",),
        ),
    )(x, prepared["qw1"], prepared["b1"], prepared["qw2"], prepared["b2"],
      prepared["qw3"], prepared["b3"], prepared["wscales"])

    return out[:B, :OUT_FEATURES]


def init_params(key):
    """Deterministic init mimicking torch.nn.Linear (uniform +/- 1/sqrt(fan_in))."""
    ks = jax.random.split(key, 6)

    def lin(kw, kb, fan_in, fan_out):
        bound = 1.0 / jnp.sqrt(float(fan_in))
        w = jax.random.uniform(kw, (fan_out, fan_in), jnp.float32, -bound, bound)
        b = jax.random.uniform(kb, (fan_out,), jnp.float32, -bound, bound)
        return w, b

    w1, b1 = lin(ks[0], ks[1], IN_FEATURES, HIDDEN)
    w2, b2 = lin(ks[2], ks[3], HIDDEN, HIDDEN)
    w3, b3 = lin(ks[4], ks[5], HIDDEN, OUT_FEATURES)
    return {"w1": w1, "b1": b1, "w2": w2, "b2": b2, "w3": w3, "b3": b3}


if __name__ == "__main__":
    key = jax.random.PRNGKey(0)
    k_x, k_p = jax.random.split(key)

    # MNIST-like flattened input (values roughly in [0, 1)).
    x = jax.random.uniform(k_x, (BATCH, IN_FEATURES), jnp.float32)
    params = init_params(k_p)

    prepared = prepare_params(params)        # one-time weight quantization / layout prep
    out = quantized_nn_forward(x, prepared)
    out = jax.block_until_ready(out)

    assert out.shape == (BATCH, OUT_FEATURES)
    assert out.dtype == jnp.float32
    print("KERNEL_OK")
</pallas_src>

<mosaic_0001>
module attributes {stable_mosaic.version = 11 : i64} {
  func.func @qnn_kernel(%arg0: i32, %arg1: memref<32x896xbf16, #tpu.memory_space<vmem>>, %arg2: memref<896x256xi8, #tpu.memory_space<vmem>>, %arg3: memref<1x256xf32, #tpu.memory_space<vmem>>, %arg4: memref<256x256xi8, #tpu.memory_space<vmem>>, %arg5: memref<1x256xf32, #tpu.memory_space<vmem>>, %arg6: memref<256x128xi8, #tpu.memory_space<vmem>>, %arg7: memref<1x128xf32, #tpu.memory_space<vmem>>, %arg8: memref<3xf32, #tpu.memory_space<smem>>, %arg9: memref<32x128xf32, #tpu.memory_space<vmem>>) attributes {dimension_semantics = [#tpu.dimension_semantics<parallel>], iteration_bounds = array<i64: 1>, scalar_prefetch = 0 : i64, scratch_operands = 0 : i64, tpu.core_type = #tpu.core_type<tc>, window_params = [{transform_indices = @transform_0, window_bounds = array<i64: 32, 896>}, {pipeline_mode = #tpu.pipeline_mode<synchronous>, transform_indices = @transform_1, window_bounds = array<i64: 896, 256>}, {pipeline_mode = #tpu.pipeline_mode<synchronous>, transform_indices = @transform_2, window_bounds = array<i64: 1, 256>}, {pipeline_mode = #tpu.pipeline_mode<synchronous>, transform_indices = @transform_3, window_bounds = array<i64: 256, 256>}, {pipeline_mode = #tpu.pipeline_mode<synchronous>, transform_indices = @transform_4, window_bounds = array<i64: 1, 256>}, {pipeline_mode = #tpu.pipeline_mode<synchronous>, transform_indices = @transform_5, window_bounds = array<i64: 256, 128>}, {pipeline_mode = #tpu.pipeline_mode<synchronous>, transform_indices = @transform_6, window_bounds = array<i64: 1, 128>}, {transform_indices = @transform_7, window_bounds = array<i64: 3>}, {transform_indices = @transform_8, window_bounds = array<i64: 32, 128>}]} {
    %c0 = arith.constant 0 : index
    %c0_0 = arith.constant 0 : index
    %0 = vector.load %arg1[%c0, %c0_0] : memref<32x896xbf16, #tpu.memory_space<vmem>>, vector<32x896xbf16>
    %1 = arith.extf %0 : vector<32x896xbf16> to vector<32x896xf32>
    %2 = math.absf %1 : vector<32x896xf32>
    %3 = vector.shape_cast %2 : vector<32x896xf32> to vector<1x32x896xf32>
    %cst = arith.constant dense<0xFF800000> : vector<1xf32>
    %4 = vector.multi_reduction <maximumf>, %3, %cst [1, 2] : vector<1x32x896xf32> to vector<1xf32>
    %5 = vector.shape_cast %4 : vector<1xf32> to vector<1x1x1xf32>
    %6 = vector.extract %5[0, 0, 0] : f32 from vector<1x1x1xf32>
    %7 = vector.broadcast %6 : f32 to vector<1x1xf32>
    %cst_1 = arith.constant 9.99999993E-9 : f32
    %8 = vector.broadcast %cst_1 : f32 to vector<1x1xf32>
    %9 = arith.maximumf %7, %8 : vector<1x1xf32>
    %cst_2 = arith.constant 7.000000e+00 : f32
    %10 = vector.broadcast %cst_2 : f32 to vector<1x1xf32>
    %11 = arith.divf %10, %9 : vector<1x1xf32>
    %cst_3 = arith.constant 0.142857149 : f32
    %12 = vector.broadcast %cst_3 : f32 to vector<1x1xf32>
    %13 = arith.mulf %9, %12 : vector<1x1xf32>
    %14 = vector.broadcast %11 : vector<1x1xf32> to vector<32x896xf32>
    %15 = arith.mulf %1, %14 : vector<32x896xf32>
    %16 = math.roundeven %15 : vector<32x896xf32>
    %cst_4 = arith.constant -7.000000e+00 : f32
    %cst_5 = arith.constant 7.000000e+00 : f32
    %17 = vector.broadcast %cst_4 : f32 to vector<32x896xf32>
    %18 = arith.maximumf %17, %16 : vector<32x896xf32>
    %19 = vector.broadcast %cst_5 : f32 to vector<32x896xf32>
    %20 = arith.minimumf %19, %18 : vector<32x896xf32>
    %21 = arith.truncf %20 : vector<32x896xf32> to vector<32x896xbf16>
    %c0_6 = arith.constant 0 : index
    %c0_7 = arith.constant 0 : index
    %22 = vector.load %arg2[%c0_6, %c0_7] : memref<896x256xi8, #tpu.memory_space<vmem>>, vector<896x256xi8>
    %23 = arith.sitofp %22 : vector<896x256xi8> to vector<896x256xbf16>
    %cst_8 = arith.constant dense<0.000000e+00> : vector<32x256xf32>
    %24 = tpu.matmul %21, %23, %cst_8 {dimension_numbers = #tpu.dot_dimension_numbers<[1], [0], [0], [1], [0, 0, 1, 1], [], []>} : vector<32x896xbf16>, vector<896x256xbf16>, vector<32x256xf32> -> vector<32x256xf32>
    %c0_9 = arith.constant 0 : index
    %25 = memref.load %arg8[%c0_9] : memref<3xf32, #tpu.memory_space<smem>>
    %26 = vector.broadcast %25 : f32 to vector<1x1xf32>
    %27 = arith.mulf %13, %26 : vector<1x1xf32>
    %28 = vector.broadcast %27 : vector<1x1xf32> to vector<32x256xf32>
    %29 = arith.mulf %24, %28 : vector<32x256xf32>
    %c0_10 = arith.constant 0 : index
    %c0_11 = arith.constant 0 : index
    %30 = vector.load %arg3[%c0_10, %c0_11] : memref<1x256xf32, #tpu.memory_space<vmem>>, vector<1x256xf32>
    %31 = vector.broadcast %30 : vector<1x256xf32> to vector<32x256xf32>
    %32 = arith.addf %29, %31 : vector<32x256xf32>
    %cst_12 = arith.constant 0.000000e+00 : f32
    %33 = vector.broadcast %cst_12 : f32 to vector<32x256xf32>
    %34 = arith.maximumf %32, %33 : vector<32x256xf32>
    %35 = vector.shape_cast %34 : vector<32x256xf32> to vector<1x32x256xf32>
    %cst_13 = arith.constant dense<0xFF800000> : vector<1xf32>
    %36 = vector.multi_reduction <maximumf>, %35, %cst_13 [1, 2] : vector<1x32x256xf32> to vector<1xf32>
    %37 = vector.shape_cast %36 : vector<1xf32> to vector<1x1x1xf32>
    %38 = vector.extract %37[0, 0, 0] : f32 from vector<1x1x1xf32>
    %39 = vector.broadcast %38 : f32 to vector<1x1xf32>
    %cst_14 = arith.constant 9.99999993E-9 : f32
    %40 = vector.broadcast %cst_14 : f32 to vector<1x1xf32>
    %41 = arith.maximumf %39, %40 : vector<1x1xf32>
    %cst_15 = arith.constant 7.000000e+00 : f32
    %42 = vector.broadcast %cst_15 : f32 to vector<1x1xf32>
    %43 = arith.divf %42, %41 : vector<1x1xf32>
    %cst_16 = arith.constant 0.142857149 : f32
    %44 = vector.broadcast %cst_16 : f32 to vector<1x1xf32>
    %45 = arith.mulf %41, %44 : vector<1x1xf32>
    %46 = vector.broadcast %43 : vector<1x1xf32> to vector<32x256xf32>
    %47 = arith.mulf %34, %46 : vector<32x256xf32>
    %48 = math.roundeven %47 : vector<32x256xf32>
    %cst_17 = arith.constant 0.000000e+00 : f32
    %cst_18 = arith.constant 7.000000e+00 : f32
    %49 = vector.broadcast %cst_17 : f32 to vector<32x256xf32>
    %50 = arith.maximumf %49, %48 : vector<32x256xf32>
    %51 = vector.broadcast %cst_18 : f32 to vector<32x256xf32>
    %52 = arith.minimumf %51, %50 : vector<32x256xf32>
    %53 = arith.truncf %52 : vector<32x256xf32> to vector<32x256xbf16>
    %c0_19 = arith.constant 0 : index
    %c0_20 = arith.constant 0 : index
    %54 = vector.load %arg4[%c0_19, %c0_20] : memref<256x256xi8, #tpu.memory_space<vmem>>, vector<256x256xi8>
    %55 = arith.sitofp %54 : vector<256x256xi8> to vector<256x256xbf16>
    %cst_21 = arith.constant dense<0.000000e+00> : vector<32x256xf32>
    %56 = tpu.matmul %53, %55, %cst_21 {dimension_numbers = #tpu.dot_dimension_numbers<[1], [0], [0], [1], [0, 0, 1, 1], [], []>} : vector<32x256xbf16>, vector<256x256xbf16>, vector<32x256xf32> -> vector<32x256xf32>
    %c1 = arith.constant 1 : index
    %57 = memref.load %arg8[%c1] : memref<3xf32, #tpu.memory_space<smem>>
    %58 = vector.broadcast %57 : f32 to vector<1x1xf32>
    %59 = arith.mulf %45, %58 : vector<1x1xf32>
    %60 = vector.broadcast %59 : vector<1x1xf32> to vector<32x256xf32>
    %61 = arith.mulf %56, %60 : vector<32x256xf32>
    %c0_22 = arith.constant 0 : index
    %c0_23 = arith.constant 0 : index
    %62 = vector.load %arg5[%c0_22, %c0_23] : memref<1x256xf32, #tpu.memory_space<vmem>>, vector<1x256xf32>
    %63 = vector.broadcast %62 : vector<1x256xf32> to vector<32x256xf32>
    %64 = arith.addf %61, %63 : vector<32x256xf32>
    %cst_24 = arith.constant 0.000000e+00 : f32
    %65 = vector.broadcast %cst_24 : f32 to vector<32x256xf32>
    %66 = arith.maximumf %64, %65 : vector<32x256xf32>
    %67 = vector.shape_cast %66 : vector<32x256xf32> to vector<1x32x256xf32>
    %cst_25 = arith.constant dense<0xFF800000> : vector<1xf32>
    %68 = vector.multi_reduction <maximumf>, %67, %cst_25 [1, 2] : vector<1x32x256xf32> to vector<1xf32>
    %69 = vector.shape_cast %68 : vector<1xf32> to vector<1x1x1xf32>
    %70 = vector.extract %69[0, 0, 0] : f32 from vector<1x1x1xf32>
    %71 = vector.broadcast %70 : f32 to vector<1x1xf32>
    %cst_26 = arith.constant 9.99999993E-9 : f32
    %72 = vector.broadcast %cst_26 : f32 to vector<1x1xf32>
    %73 = arith.maximumf %71, %72 : vector<1x1xf32>
    %cst_27 = arith.constant 7.000000e+00 : f32
    %74 = vector.broadcast %cst_27 : f32 to vector<1x1xf32>
    %75 = arith.divf %74, %73 : vector<1x1xf32>
    %cst_28 = arith.constant 0.142857149 : f32
    %76 = vector.broadcast %cst_28 : f32 to vector<1x1xf32>
    %77 = arith.mulf %73, %76 : vector<1x1xf32>
    %78 = vector.broadcast %75 : vector<1x1xf32> to vector<32x256xf32>
    %79 = arith.mulf %66, %78 : vector<32x256xf32>
    %80 = math.roundeven %79 : vector<32x256xf32>
    %cst_29 = arith.constant 0.000000e+00 : f32
    %cst_30 = arith.constant 7.000000e+00 : f32
    %81 = vector.broadcast %cst_29 : f32 to vector<32x256xf32>
    %82 = arith.maximumf %81, %80 : vector<32x256xf32>
    %83 = vector.broadcast %cst_30 : f32 to vector<32x256xf32>
    %84 = arith.minimumf %83, %82 : vector<32x256xf32>
    %85 = arith.truncf %84 : vector<32x256xf32> to vector<32x256xbf16>
    %c0_31 = arith.constant 0 : index
    %c0_32 = arith.constant 0 : index
    %86 = vector.load %arg6[%c0_31, %c0_32] : memref<256x128xi8, #tpu.memory_space<vmem>>, vector<256x128xi8>
    %87 = arith.sitofp %86 : vector<256x128xi8> to vector<256x128xbf16>
    %cst_33 = arith.constant dense<0.000000e+00> : vector<32x128xf32>
    %88 = tpu.matmul %85, %87, %cst_33 {dimension_numbers = #tpu.dot_dimension_numbers<[1], [0], [0], [1], [0, 0, 1, 1], [], []>} : vector<32x256xbf16>, vector<256x128xbf16>, vector<32x128xf32> -> vector<32x128xf32>
    %c2 = arith.constant 2 : index
    %89 = memref.load %arg8[%c2] : memref<3xf32, #tpu.memory_space<smem>>
    %90 = vector.broadcast %89 : f32 to vector<1x1xf32>
    %91 = arith.mulf %77, %90 : vector<1x1xf32>
    %92 = vector.broadcast %91 : vector<1x1xf32> to vector<32x128xf32>
    %93 = arith.mulf %88, %92 : vector<32x128xf32>
    %c0_34 = arith.constant 0 : index
    %c0_35 = arith.constant 0 : index
    %94 = vector.load %arg7[%c0_34, %c0_35] : memref<1x128xf32, #tpu.memory_space<vmem>>, vector<1x128xf32>
    %95 = vector.broadcast %94 : vector<1x128xf32> to vector<32x128xf32>
    %96 = arith.addf %93, %95 : vector<32x128xf32>
    %c0_36 = arith.constant 0 : index
    %c0_37 = arith.constant 0 : index
    %97 = vector.load %arg9[%c0_36, %c0_37] : memref<32x128xf32, #tpu.memory_space<vmem>>, vector<32x128xf32>
    tpu.vector_store %arg9[%c0_36, %c0_37], %96 {strides = array<i32>} : memref<32x128xf32, #tpu.memory_space<vmem>>, vector<32x128xf32>,
    return
  }
  func.func @transform_0(%arg0: i32) -> (i32, i32) {
    %c0_i32 = arith.constant 0 : i32
    %c0_i32_0 = arith.constant 0 : i32
    return %arg0, %c0_i32 : i32, i32
  }
  func.func @transform_1(%arg0: i32) -> (i32, i32) {
    %c0_i32 = arith.constant 0 : i32
    %c0_i32_0 = arith.constant 0 : i32
    %c0_i32_1 = arith.constant 0 : i32
    return %c0_i32, %c0_i32_0 : i32, i32
  }
  func.func @transform_2(%arg0: i32) -> (i32, i32) {
    %c0_i32 = arith.constant 0 : i32
    %c0_i32_0 = arith.constant 0 : i32
    %c0_i32_1 = arith.constant 0 : i32
    return %c0_i32, %c0_i32_0 : i32, i32
  }
  func.func @transform_3(%arg0: i32) -> (i32, i32) {
    %c0_i32 = arith.constant 0 : i32
    %c0_i32_0 = arith.constant 0 : i32
    %c0_i32_1 = arith.constant 0 : i32
    return %c0_i32, %c0_i32_0 : i32, i32
  }
  func.func @transform_4(%arg0: i32) -> (i32, i32) {
    %c0_i32 = arith.constant 0 : i32
    %c0_i32_0 = arith.constant 0 : i32
    %c0_i32_1 = arith.constant 0 : i32
    return %c0_i32, %c0_i32_0 : i32, i32
  }
  func.func @transform_5(%arg0: i32) -> (i32, i32) {
    %c0_i32 = arith.constant 0 : i32
    %c0_i32_0 = arith.constant 0 : i32
    %c0_i32_1 = arith.constant 0 : i32
    return %c0_i32, %c0_i32_0 : i32, i32
  }
  func.func @transform_6(%arg0: i32) -> (i32, i32) {
    %c0_i32 = arith.constant 0 : i32
    %c0_i32_0 = arith.constant 0 : i32
    %c0_i32_1 = arith.constant 0 : i32
    return %c0_i32, %c0_i32_0 : i32, i32
  }
  func.func @transform_7(%arg0: i32) -> i32 {
    %c0_i32 = arith.constant 0 : i32
    %c0_i32_0 = arith.constant 0 : i32
    return %c0_i32 : i32
  }
  func.func @transform_8(%arg0: i32) -> (i32, i32) {
    %c0_i32 = arith.constant 0 : i32
    %c0_i32_0 = arith.constant 0 : i32
    return %arg0, %c0_i32 : i32, i32
  }
}

</mosaic_0001>

<llo_original>
// kernel: tpu_custom_call.1
$region0: #{tpu_custom_call.1}
  #allocation0 [shape = 'u32[]', space=smem, size = 0x4, offset = 0x4, fixed_abs, tag = 'smem constant byte address 0x4 - core index']
  #allocation1 [shape = 'u32[144,128]{1,0:T(1,128)}', space=vmem, size = 0x12000, scoped, tag = 'internal scratch']
  %s0 = inlined_call_operand.hbm [shape: bf16[32,896], index: 0, kind: input, shape index: {}]
  %s1 = inlined_call_operand.hbm [shape: s8[896,256], index: 1, kind: input, shape index: {}]
  %s2 = inlined_call_operand.vmem [shape: f32[1,256], index: 2, kind: input, shape index: {}]
  %s3 = inlined_call_operand.hbm [shape: s8[256,256], index: 3, kind: input, shape index: {}]
  %s4 = inlined_call_operand.vmem [shape: f32[1,256], index: 4, kind: input, shape index: {}]
  %s5 = inlined_call_operand.hbm [shape: s8[256,128], index: 5, kind: input, shape index: {}]
  %s6 = inlined_call_operand.vmem [shape: f32[1,128], index: 6, kind: input, shape index: {}]
  %s7 = inlined_call_operand.vmem [shape: f32[3], index: 7, kind: input, shape index: {}]
  %s8 = inlined_call_operand.hbm [shape: f32[32,128], index: 8, kind: output, shape index: {}]
  %s9 = sld [smem:[#allocation0]]
  $region62: #{tpu_custom_call.1} parent=0
    _
  %s11 = ssub.s32 1, %s9
  %s12 = scalar_select 0, %s11, %s9
  $region1: #{tpu_custom_call.1} parent=0
    #allocation2 [shape = 'u8[57344]{0}', space=vmem, size = 0xe000, scoped, tag = 'input window, operand 0, single buffered']
    #allocation3 [shape = 's32[1]{0}', space=sflag, size = 0x4, scoped, tag = 'scoped memory for tpu_custom_call.1']
    #allocation4 [shape = 's32[1]{0}', space=sflag, size = 0x4, scoped, tag = 'scoped memory for tpu_custom_call.1']
    #allocation5 [shape = 's32[1]{0}', space=sflag, size = 0x4, scoped, tag = 'scoped memory for tpu_custom_call.1']
    #allocation6 [shape = 'u8[229376]{0}', space=vmem, size = 0x38000, scoped, tag = 'input window, operand 1, single buffered']
    #allocation7 [shape = 's32[1]{0}', space=sflag, size = 0x4, scoped, tag = 'scoped memory for tpu_custom_call.1']
    #allocation8 [shape = 'u8[65536]{0}', space=vmem, size = 0x10000, scoped, tag = 'input window, operand 3, single buffered']
    #allocation9 [shape = 'u8[32768]{0}', space=vmem, size = 0x8000, scoped, tag = 'input window, operand 5, single buffered']
    #allocation10 [shape = 's32[1]{0}', space=sflag, size = 0x4, scoped, tag = 'scoped memory for tpu_custom_call.1']
    #allocation11 [shape = 'u8[512]{0}', space=smem, size = 0x200, scoped, tag = 'input window, operand 7, single buffered']
    #allocation12 [shape = 'u8[16384]{0}', space=vmem, size = 0x4000, scoped, tag = 'output window, operand 0, single buffered']
    %13 = vsyncpa [#allocation3], 0
    %14 = vsyncpa [#allocation7], 0
    %15 = vsyncpa [#allocation10], 0
    %16 = vsyncpa [#allocation5], 0
    %17 = vsyncpa [#allocation4], 0
    // Predicated region
    $region2: #{tpu_custom_call.1} parent=1 // pred_check
      _
    $region3: #{tpu_custom_call.1} parent=1 // pred_check_branch
      %19 = sbr.rel (0) target = $region5
    $region4: #{tpu_custom_call.1} parent=1 // pred_region
      %s21 = ssub.s32 1792, 1792
      %22 = vsyncadd [#allocation3], %s21
      %s23 = sshll.u32 [#allocation2], 4
      %s24 = int_to_ptr.vmem [resolvable:$true] %s23
      %29 = dma.hbm_to_vmem [thread:$0]  %s0, 1792, %s24, [#allocation3], 448, 448, 28
    $region5: #{tpu_custom_call.1} parent=1 // pred_fallthru
      _
    // Predicated region
    $region6: #{tpu_custom_call.1} parent=1 // pred_check
      _
    $region7: #{tpu_custom_call.1} parent=1 // pred_check_branch
      %31 = sbr.rel (0) target = $region9
    $region8: #{tpu_custom_call.1} parent=1 // pred_region
      %s33 = ssub.s32 7168, 7168
      %34 = vsyncadd [#allocation7], %s33
      %s35 = sshll.u32 [#allocation6], 4
      %s36 = int_to_ptr.vmem [resolvable:$true] %s35
      %41 = dma.hbm_to_vmem [thread:$0]  %s1, 7168, %s36, [#allocation7], 256, 256, 16
    $region9: #{tpu_custom_call.1} parent=1 // pred_fallthru
      _
    // Predicated region
    $region10: #{tpu_custom_call.1} parent=1 // pred_check
      _
    $region11: #{tpu_custom_call.1} parent=1 // pred_check_branch
      %43 = sbr.rel (0) target = $region13
    $region12: #{tpu_custom_call.1} parent=1 // pred_region
      _
    $region13: #{tpu_custom_call.1} parent=1 // pred_fallthru
      _
    // Predicated region
    $region14: #{tpu_custom_call.1} parent=1 // pred_check
      _
    $region15: #{tpu_custom_call.1} parent=1 // pred_check_branch
      %45 = sbr.rel (0) target = $region17
    $region16: #{tpu_custom_call.1} parent=1 // pred_region
      %s47 = ssub.s32 2048, 2048
      %48 = vsyncadd [#allocation7], %s47
      %s49 = sshll.u32 [#allocation8], 4
      %s50 = int_to_ptr.vmem [resolvable:$true] %s49
      %55 = dma.hbm_to_vmem [thread:$0]  %s3, 2048, %s50, [#allocation7], 256, 256, 16
    $region17: #{tpu_custom_call.1} parent=1 // pred_fallthru
      _
    // Predicated region
    $region18: #{tpu_custom_call.1} parent=1 // pred_check
      _
    $region19: #{tpu_custom_call.1} parent=1 // pred_check_branch
      %57 = sbr.rel (0) target = $region21
    $region20: #{tpu_custom_call.1} parent=1 // pred_region
      _
    $region21: #{tpu_custom_call.1} parent=1 // pred_fallthru
      _
    // Predicated region
    $region22: #{tpu_custom_call.1} parent=1 // pred_check
      _
    $region23: #{tpu_custom_call.1} parent=1 // pred_check_branch
      %59 = sbr.rel (0) target = $region25
    $region24: #{tpu_custom_call.1} parent=1 // pred_region
      %s61 = ssub.s32 1024, 1024
      %62 = vsyncadd [#allocation10], %s61
      %s63 = sshll.u32 [#allocation9], 4
      %s64 = int_to_ptr.vmem [resolvable:$true] %s63
      %69 = dma.hbm_to_vmem [thread:$0]  %s5, 1024, %s64, [#allocation10], 128, 128, 8
    $region25: #{tpu_custom_call.1} parent=1 // pred_fallthru
      _
    // Predicated region
    $region26: #{tpu_custom_call.1} parent=1 // pred_check
      _
    $region27: #{tpu_custom_call.1} parent=1 // pred_check_branch
      %71 = sbr.rel (0) target = $region29
    $region28: #{tpu_custom_call.1} parent=1 // pred_region
      _
    $region29: #{tpu_custom_call.1} parent=1 // pred_fallthru
      _
    // Predicated region
    $region30: #{tpu_custom_call.1} parent=1 // pred_check
      _
    $region31: #{tpu_custom_call.1} parent=1 // pred_check_branch
      %73 = sbr.rel (0) target = $region33
    $region32: #{tpu_custom_call.1} parent=1 // pred_region
      %s75 = ssub.s32 16, 16
      %76 = vsyncadd [#allocation5], %s75
      %s78 = sshll.u32 %s7, 4
      %s79 = int_to_ptr.vmem [resolvable:$true] %s78
      %81 = dma.vmem_to_smem %s79, 16, [#allocation11], [#allocation5]
    $region33: #{tpu_custom_call.1} parent=1 // pred_fallthru
      _
    // Predicated region
    $region34: #{tpu_custom_call.1} parent=1 // pred_check
      _
    $region35: #{tpu_custom_call.1} parent=1 // pred_check_branch
      %83 = sbr.rel (0) target = $region37
    $region36: #{tpu_custom_call.1} parent=1 // pred_region
      %84 = dma.done [#allocation3], 1792
    $region37: #{tpu_custom_call.1} parent=1 // pred_fallthru
      _
    // Predicated region
    $region38: #{tpu_custom_call.1} parent=1 // pred_check
      _
    $region39: #{tpu_custom_call.1} parent=1 // pred_check_branch
      %86 = sbr.rel (0) target = $region41
    $region40: #{tpu_custom_call.1} parent=1 // pred_region
      %87 = dma.done [#allocation7], 7168
    $region41: #{tpu_custom_call.1} parent=1 // pred_fallthru
      _
    // Predicated region
    $region42: #{tpu_custom_call.1} parent=1 // pred_check
      _
    $region43: #{tpu_custom_call.1} parent=1 // pred_check_branch
      %89 = sbr.rel (0) target = $region45
    $region44: #{tpu_custom_call.1} parent=1 // pred_region
      %90 = dma.done [#allocation7], 2048
    $region45: #{tpu_custom_call.1} parent=1 // pred_fallthru
      _
    // Predicated region
    $region46: #{tpu_custom_call.1} parent=1 // pred_check
      _
    $region47: #{tpu_custom_call.1} parent=1 // pred_check_branch
      %92 = sbr.rel (0) target = $region49
    $region48: #{tpu_custom_call.1} parent=1 // pred_region
      %93 = dma.done [#allocation10], 1024
    $region49: #{tpu_custom_call.1} parent=1 // pred_fallthru
      _
    // Predicated region
    $region50: #{tpu_custom_call.1} parent=1 // pred_check
      _
    $region51: #{tpu_custom_call.1} parent=1 // pred_check_branch
      %95 = sbr.rel (0) target = $region53
    $region52: #{tpu_custom_call.1} parent=1 // pred_region
      %96 = dma.done [#allocation5], 16
    $region53: #{tpu_custom_call.1} parent=1 // pred_fallthru
      _
    %97 = sfence
    %v99 = vld [vmem:[#allocation2] sm:$0xff]
    %v100 = vld [vmem:[#allocation2 + $0x8] sm:$0xff]
    %v101 = vld [vmem:[#allocation2 + $0x10] sm:$0xff]
    %v102 = vld [vmem:[#allocation2 + $0x18] sm:$0xf]
    %v103 = vld [vmem:[#allocation2 + $0x1c] sm:$0xff]
    %v104 = vld [vmem:[#allocation2 + $0x24] sm:$0xff]
    %v105 = vld [vmem:[#allocation2 + $0x2c] sm:$0xff]
    %v106 = vld [vmem:[#allocation2 + $0x34] sm:$0xf]
    %v107 = vld [vmem:[#allocation2 + $0x38] sm:$0xff]
    %v108 = vld [vmem:[#allocation2 + $0x40] sm:$0xff]
    %v109 = vld [vmem:[#allocation2 + $0x48] sm:$0xff]
    %v110 = vld [vmem:[#allocation2 + $0x50] sm:$0xf]
    %v111 = vld [vmem:[#allocation2 + $0x54] sm:$0xff]
    %v112 = vld [vmem:[#allocation2 + $0x5c] sm:$0xff]
    %v113 = vld [vmem:[#allocation2 + $0x64] sm:$0xff]
    %v114 = vld [vmem:[#allocation2 + $0x6c] sm:$0xf]
    %v115 = vunpack.c.l.bf16 %v99
    %v116 = vunpack.c.h.bf16 %v99
    %v117 = vunpack.c.l.bf16 %v100
    %v118 = vunpack.c.h.bf16 %v100
    %v119 = vunpack.c.l.bf16 %v101
    %v120 = vunpack.c.h.bf16 %v101
    %v121 = vunpack.c.l.bf16 %v102
    %v122 = vunpack.c.l.bf16 %v103
    %v123 = vunpack.c.h.bf16 %v103
    %v124 = vunpack.c.l.bf16 %v104
    %v125 = vunpack.c.h.bf16 %v104
    %v126 = vunpack.c.l.bf16 %v105
    %v127 = vunpack.c.h.bf16 %v105
    %v128 = vunpack.c.l.bf16 %v106
    %v129 = vunpack.c.l.bf16 %v107
    %v130 = vunpack.c.h.bf16 %v107
    %v131 = vunpack.c.l.bf16 %v108
    %v132 = vunpack.c.h.bf16 %v108
    %v133 = vunpack.c.l.bf16 %v109
    %v134 = vunpack.c.h.bf16 %v109
    %v135 = vunpack.c.l.bf16 %v110
    %v136 = vunpack.c.l.bf16 %v111
    %v137 = vunpack.c.h.bf16 %v111
    %v138 = vunpack.c.l.bf16 %v112
    %v139 = vunpack.c.h.bf16 %v112
    %v140 = vunpack.c.l.bf16 %v113
    %v141 = vunpack.c.h.bf16 %v113
    %v142 = vunpack.c.l.bf16 %v114
    %v143 = vand.u32 2147483647, %v115
    %v144 = vand.u32 2147483647, %v116
    %v145 = vand.u32 2147483647, %v117
    %v146 = vand.u32 2147483647, %v118
    %v147 = vand.u32 2147483647, %v119
    %v148 = vand.u32 2147483647, %v120
    %v149 = vand.u32 2147483647, %v121
    %v150 = vand.u32 2147483647, %v122
    %v151 = vand.u32 2147483647, %v123
    %v152 = vand.u32 2147483647, %v124
    %v153 = vand.u32 2147483647, %v125
    %v154 = vand.u32 2147483647, %v126
    %v155 = vand.u32 2147483647, %v127
    %v156 = vand.u32 2147483647, %v128
    %v157 = vand.u32 2147483647, %v129
    %v158 = vand.u32 2147483647, %v130
    %v159 = vand.u32 2147483647, %v131
    %v160 = vand.u32 2147483647, %v132
    %v161 = vand.u32 2147483647, %v133
    %v162 = vand.u32 2147483647, %v134
    %v163 = vand.u32 2147483647, %v135
    %v164 = vand.u32 2147483647, %v136
    %v165 = vand.u32 2147483647, %v137
    %v166 = vand.u32 2147483647, %v138
    %v167 = vand.u32 2147483647, %v139
    %v168 = vand.u32 2147483647, %v140
    %v169 = vand.u32 2147483647, %v141
    %v170 = vand.u32 2147483647, %v142
    %v171 = vmax.f32 %v143, %v147
    %v172 = vmax.f32 %v144, %v148
    %v173 = vmax.f32 %v145, %v149
    %v174 = vmax.f32 %v146, %v150
    %v175 = vmax.f32 %v171, %v151
    %v176 = vmax.f32 %v172, %v152
    %v177 = vmax.f32 %v173, %v153
    %v178 = vmax.f32 %v174, %v154
    %v179 = vmax.f32 %v175, %v155
    %v180 = vmax.f32 %v176, %v156
    %v181 = vmax.f32 %v177, %v157
    %v182 = vmax.f32 %v178, %v158
    %v183 = vmax.f32 %v179, %v159
    %v184 = vmax.f32 %v180, %v160
    %v185 = vmax.f32 %v181, %v161
    %v186 = vmax.f32 %v182, %v162
    %v187 = vmax.f32 %v183, %v163
    %v188 = vmax.f32 %v184, %v164
    %v189 = vmax.f32 %v185, %v165
    %v190 = vmax.f32 %v186, %v166
    %v191 = vmax.f32 %v187, %v167
    %v192 = vmax.f32 %v188, %v168
    %v193 = vmax.f32 %v189, %v169
    %v194 = vmax.f32 %v190, %v170
    %v195 = vmax.f32 %v191, %v192
    %v196 = vmax.f32 %v193, %v194
    %v197 = vmax.f32 %v195, %v196
    %198 = vmax.xlane.f32.xlu0 %v197
    %v199 = vpop.xlane.xlu0 %198
    %v200 = vrot.slane %v199, 4
    %v201 = vmax.f32 %v199, %v200
    %v202 = vrot.slane %v201, 2
    %v203 = vmax.f32 %v201, %v202
    %v204 = vrot.slane %v203, 1
    %v205 = vmax.f32 %v203, %v204
    %s206 = vtos %v205
    %v207 = vstv %s206
    %v208 = vmax.f32 %v207, 1e-08
    %v209 = vrcp.pop %v208
    %v210 = vmul.f32 7.0, %v209
    %v211 = vmul.f32 %v208, 0.14285715
    %v212 = vmul.f32 %v115, %v210
    %v213 = vmul.f32 %v116, %v210
    %v214 = vmul.f32 %v117, %v210
    %v215 = vmul.f32 %v118, %v210
    %v216 = vmul.f32 %v119, %v210
    %v217 = vmul.f32 %v120, %v210
    %v218 = vmul.f32 %v121, %v210
    %v219 = vmul.f32 %v122, %v210
    %v220 = vmul.f32 %v123, %v210
    %v221 = vmul.f32 %v124, %v210
    %v222 = vmul.f32 %v125, %v210
    %v223 = vmul.f32 %v126, %v210
    %v224 = vmul.f32 %v127, %v210
    %v225 = vmul.f32 %v128, %v210
    %v226 = vmul.f32 %v129, %v210
    %v227 = vmul.f32 %v130, %v210
    %v228 = vmul.f32 %v131, %v210
    %v229 = vmul.f32 %v132, %v210
    %v230 = vmul.f32 %v133, %v210
    %v231 = vmul.f32 %v134, %v210
    %v232 = vmul.f32 %v135, %v210
    %v233 = vmul.f32 %v136, %v210
    %v234 = vmul.f32 %v137, %v210
    %v235 = vmul.f32 %v138, %v210
    %v236 = vmul.f32 %v139, %v210
    %v237 = vmul.f32 %v140, %v210
    %v238 = vmul.f32 %v141, %v210
    %v239 = vmul.f32 %v142, %v210
    %v240 = vround.ne.pseudo %v212
    %v241 = vround.ne.pseudo %v213
    %v242 = vround.ne.pseudo %v214
    %v243 = vround.ne.pseudo %v215
    %v244 = vround.ne.pseudo %v216
    %v245 = vround.ne.pseudo %v217
    %v246 = vround.ne.pseudo %v218
    %v247 = vround.ne.pseudo %v219
    %v248 = vround.ne.pseudo %v220
    %v249 = vround.ne.pseudo %v221
    %v250 = vround.ne.pseudo %v222
    %v251 = vround.ne.pseudo %v223
    %v252 = vround.ne.pseudo %v224
    %v253 = vround.ne.pseudo %v225
    %v254 = vround.ne.pseudo %v226
    %v255 = vround.ne.pseudo %v227
    %v256 = vround.ne.pseudo %v228
    %v257 = vround.ne.pseudo %v229
    %v258 = vround.ne.pseudo %v230
    %v259 = vround.ne.pseudo %v231
    %v260 = vround.ne.pseudo %v232
    %v261 = vround.ne.pseudo %v233
    %v262 = vround.ne.pseudo %v234
    %v263 = vround.ne.pseudo %v235
    %v264 = vround.ne.pseudo %v236
    %v265 = vround.ne.pseudo %v237
    %v266 = vround.ne.pseudo %v238
    %v267 = vround.ne.pseudo %v239
    %v268 = vmax.f32 %v240, -7.0
    %v269 = vmax.f32 %v241, -7.0
    %v270 = vmax.f32 %v242, -7.0
    %v271 = vmax.f32 %v243, -7.0
    %v272 = vmax.f32 %v244, -7.0
    %v273 = vmax.f32 %v245, -7.0
    %v274 = vmax.f32 %v246, -7.0
    %v275 = vmax.f32 %v247, -7.0
    %v276 = vmax.f32 %v248, -7.0
    %v277 = vmax.f32 %v249, -7.0
    %v278 = vmax.f32 %v250, -7.0
    %v279 = vmax.f32 %v251, -7.0
    %v280 = vmax.f32 %v252, -7.0
    %v281 = vmax.f32 %v253, -7.0
    %v282 = vmax.f32 %v254, -7.0
    %v283 = vmax.f32 %v255, -7.0
    %v284 = vmax.f32 %v256, -7.0
    %v285 = vmax.f32 %v257, -7.0
    %v286 = vmax.f32 %v258, -7.0
    %v287 = vmax.f32 %v259, -7.0
    %v288 = vmax.f32 %v260, -7.0
    %v289 = vmax.f32 %v261, -7.0
    %v290 = vmax.f32 %v262, -7.0
    %v291 = vmax.f32 %v263, -7.0
    %v292 = vmax.f32 %v264, -7.0
    %v293 = vmax.f32 %v265, -7.0
    %v294 = vmax.f32 %v266, -7.0
    %v295 = vmax.f32 %v267, -7.0
    %v296 = vmin.f32 %v268, 7.0
    %v297 = vmin.f32 %v269, 7.0
    %v298 = vmin.f32 %v270, 7.0
    %v299 = vmin.f32 %v271, 7.0
    %v300 = vmin.f32 %v272, 7.0
    %v301 = vmin.f32 %v273, 7.0
    %v302 = vmin.f32 %v274, 7.0
    %v303 = vmin.f32 %v275, 7.0
    %v304 = vmin.f32 %v276, 7.0
    %v305 = vmin.f32 %v277, 7.0
    %v306 = vmin.f32 %v278, 7.0
    %v307 = vmin.f32 %v279, 7.0
    %v308 = vmin.f32 %v280, 7.0
    %v309 = vmin.f32 %v281, 7.0
    %v310 = vmin.f32 %v282, 7.0
    %v311 = vmin.f32 %v283, 7.0
    %v312 = vmin.f32 %v284, 7.0
    %v313 = vmin.f32 %v285, 7.0
    %v314 = vmin.f32 %v286, 7.0
    %v315 = vmin.f32 %v287, 7.0
    %v316 = vmin.f32 %v288, 7.0
    %v317 = vmin.f32 %v289, 7.0
    %v318 = vmin.f32 %v290, 7.0
    %v319 = vmin.f32 %v291, 7.0
    %v320 = vmin.f32 %v292, 7.0
    %v321 = vmin.f32 %v293, 7.0
    %v322 = vmin.f32 %v294, 7.0
    %v323 = vmin.f32 %v295, 7.0
    %v324 = vpack.c.bf16 %v303, %v296
    %v325 = vpack.c.bf16 %v304, %v297
    %v326 = vpack.c.bf16 %v305, %v298
    %v327 = vpack.c.bf16 %v306, %v299
    %v328 = vpack.c.bf16 %v307, %v300
    %v329 = vpack.c.bf16 %v308, %v301
    %v330 = vpack.c.bf16 %v309, %v302
    %v331 = vpack.c.bf16 %v317, %v310
    %v332 = vpack.c.bf16 %v318, %v311
    %v333 = vpack.c.bf16 %v319, %v312
    %v334 = vpack.c.bf16 %v320, %v313
    %v335 = vpack.c.bf16 %v321, %v314
    %v336 = vpack.c.bf16 %v322, %v315
    %v337 = vpack.c.bf16 %v323, %v316
    %v338 = vld [vmem:[#allocation6] sm:$0xff]
    %v339 = vld [vmem:[#allocation6 + $0x8] sm:$0xff]
    %v340 = vld [vmem:[#allocation6 + $0x10] sm:$0xff]
    %v341 = vld [vmem:[#allocation6 + $0x18] sm:$0xff]
    %v342 = vld [vmem:[#allocation6 + $0x20] sm:$0xff]
    %v343 = vld [vmem:[#allocation6 + $0x28] sm:$0xff]
    %v344 = vld [vmem:[#allocation6 + $0x30] sm:$0xff]
    %v345 = vld [vmem:[#allocation6 + $0x38] sm:$0xff]
    %v346 = vld [vmem:[#allocation6 + $0x40] sm:$0xff]
    %v347 = vld [vmem:[#allocation6 + $0x48] sm:$0xff]
    %v348 = vld [vmem:[#allocation6 + $0x50] sm:$0xff]
    %v349 = vld [vmem:[#allocation6 + $0x58] sm:$0xff]
    %v350 = vld [vmem:[#allocation6 + $0x60] sm:$0xff]
    %v351 = vld [vmem:[#allocation6 + $0x68] sm:$0xff]
    %v352 = vld [vmem:[#allocation6 + $0x70] sm:$0xff]
    %v353 = vld [vmem:[#allocation6 + $0x78] sm:$0xff]
    %v354 = vld [vmem:[#allocation6 + $0x80] sm:$0xff]
    %v355 = vld [vmem:[#allocation6 + $0x88] sm:$0xff]
    %v356 = vld [vmem:[#allocation6 + $0x90] sm:$0xff]
    %v357 = vld [vmem:[#allocation6 + $0x98] sm:$0xff]
    %v358 = vld [vmem:[#allocation6 + $0xa0] sm:$0xff]
    %v359 = vld [vmem:[#allocation6 + $0xa8] sm:$0xff]
    %v360 = vld [vmem:[#allocation6 + $0xb0] sm:$0xff]
    %v361 = vld [vmem:[#allocation6 + $0xb8] sm:$0xff]
    %v362 = vld [vmem:[#allocation6 + $0xc0] sm:$0xff]
    %v363 = vld [vmem:[#allocation6 + $0xc8] sm:$0xff]
    %v364 = vld [vmem:[#allocation6 + $0xd0] sm:$0xff]
    %v365 = vld [vmem:[#allocation6 + $0xd8] sm:$0xff]
    %v366 = vld [vmem:[#allocation6 + $0xe0] sm:$0xff]
    %v367 = vld [vmem:[#allocation6 + $0xe8] sm:$0xff]
    %v368 = vld [vmem:[#allocation6 + $0xf0] sm:$0xff]
    %v369 = vld [vmem:[#allocation6 + $0xf8] sm:$0xff]
    %v370 = vld [vmem:[#allocation6 + $0x100] sm:$0xff]
    %v371 = vld [vmem:[#allocation6 + $0x108] sm:$0xff]
    %v372 = vld [vmem:[#allocation6 + $0x110] sm:$0xff]
    %v373 = vld [vmem:[#allocation6 + $0x118] sm:$0xff]
    %v374 = vld [vmem:[#allocation6 + $0x120] sm:$0xff]
    %v375 = vld [vmem:[#allocation6 + $0x128] sm:$0xff]
    %v376 = vld [vmem:[#allocation6 + $0x130] sm:$0xff]
    %v377 = vld [vmem:[#allocation6 + $0x138] sm:$0xff]
    %v378 = vld [vmem:[#allocation6 + $0x140] sm:$0xff]
    %v379 = vld [vmem:[#allocation6 + $0x148] sm:$0xff]
    %v380 = vld [vmem:[#allocation6 + $0x150] sm:$0xff]
    %v381 = vld [vmem:[#allocation6 + $0x158] sm:$0xff]
    %v382 = vld [vmem:[#allocation6 + $0x160] sm:$0xff]
    %v383 = vld [vmem:[#allocation6 + $0x168] sm:$0xff]
    %v384 = vld [vmem:[#allocation6 + $0x170] sm:$0xff]
    %v385 = vld [vmem:[#allocation6 + $0x178] sm:$0xff]
    %v386 = vld [vmem:[#allocation6 + $0x180] sm:$0xff]
    %v387 = vld [vmem:[#allocation6 + $0x188] sm:$0xff]
    %v388 = vld [vmem:[#allocation6 + $0x190] sm:$0xff]
    %v389 = vld [vmem:[#allocation6 + $0x198] sm:$0xff]
    %v390 = vld [vmem:[#allocation6 + $0x1a0] sm:$0xff]
    %v391 = vld [vmem:[#allocation6 + $0x1a8] sm:$0xff]
    %v392 = vld [vmem:[#allocation6 + $0x1b0] sm:$0xff]
    %v393 = vld [vmem:[#allocation6 + $0x1b8] sm:$0xff]
    %v394 = vunpack.c.l.s8.bf16 %v338
    %v395 = vunpack.c.l.s8.bf16 %v339
    %v396 = vunpack.c.h.s8.bf16 %v338
    %v397 = vunpack.c.h.s8.bf16 %v339
    %v398 = vunpack.c.l.s8.bf16 %v340
    %v399 = vunpack.c.l.s8.bf16 %v341
    %v400 = vunpack.c.h.s8.bf16 %v340
    %v401 = vunpack.c.h.s8.bf16 %v341
    %v402 = vunpack.c.l.s8.bf16 %v342
    %v403 = vunpack.c.l.s8.bf16 %v343
    %v404 = vunpack.c.h.s8.bf16 %v342
    %v405 = vunpack.c.h.s8.bf16 %v343
    %v406 = vunpack.c.l.s8.bf16 %v344
    %v407 = vunpack.c.l.s8.bf16 %v345
    %v408 = vunpack.c.h.s8.bf16 %v344
    %v409 = vunpack.c.h.s8.bf16 %v345
    %v410 = vunpack.c.l.s8.bf16 %v346
    %v411 = vunpack.c.l.s8.bf16 %v347
    %v412 = vunpack.c.h.s8.bf16 %v346
    %v413 = vunpack.c.h.s8.bf16 %v347
    %v414 = vunpack.c.l.s8.bf16 %v348
    %v415 = vunpack.c.l.s8.bf16 %v349
    %v416 = vunpack.c.h.s8.bf16 %v348
    %v417 = vunpack.c.h.s8.bf16 %v349
    %v418 = vunpack.c.l.s8.bf16 %v350
    %v419 = vunpack.c.l.s8.bf16 %v351
    %v420 = vunpack.c.h.s8.bf16 %v350
    %v421 = vunpack.c.h.s8.bf16 %v351
    %v422 = vunpack.c.l.s8.bf16 %v352
    %v423 = vunpack.c.l.s8.bf16 %v353
    %v424 = vunpack.c.h.s8.bf16 %v352
    %v425 = vunpack.c.h.s8.bf16 %v353
    %v426 = vunpack.c.l.s8.bf16 %v354
    %v427 = vunpack.c.l.s8.bf16 %v355
    %v428 = vunpack.c.h.s8.bf16 %v354
    %v429 = vunpack.c.h.s8.bf16 %v355
    %v430 = vunpack.c.l.s8.bf16 %v356
    %v431 = vunpack.c.l.s8.bf16 %v357
    %v432 = vunpack.c.h.s8.bf16 %v356
    %v433 = vunpack.c.h.s8.bf16 %v357
    %v434 = vunpack.c.l.s8.bf16 %v358
    %v435 = vunpack.c.l.s8.bf16 %v359
    %v436 = vunpack.c.h.s8.bf16 %v358
    %v437 = vunpack.c.h.s8.bf16 %v359
    %v438 = vunpack.c.l.s8.bf16 %v360
    %v439 = vunpack.c.l.s8.bf16 %v361
    %v440 = vunpack.c.h.s8.bf16 %v360
    %v441 = vunpack.c.h.s8.bf16 %v361
    %v442 = vunpack.c.l.s8.bf16 %v362
    %v443 = vunpack.c.l.s8.bf16 %v363
    %v444 = vunpack.c.h.s8.bf16 %v362
    %v445 = vunpack.c.h.s8.bf16 %v363
    %v446 = vunpack.c.l.s8.bf16 %v364
    %v447 = vunpack.c.l.s8.bf16 %v365
    %v448 = vunpack.c.h.s8.bf16 %v364
    %v449 = vunpack.c.h.s8.bf16 %v365
    %v450 = vunpack.c.l.s8.bf16 %v366
    %v451 = vunpack.c.l.s8.bf16 %v367
    %v452 = vunpack.c.h.s8.bf16 %v366
    %v453 = vunpack.c.h.s8.bf16 %v367
    %v454 = vunpack.c.l.s8.bf16 %v368
    %v455 = vunpack.c.l.s8.bf16 %v369
    %v456 = vunpack.c.h.s8.bf16 %v368
    %v457 = vunpack.c.h.s8.bf16 %v369
    %v458 = vunpack.c.l.s8.bf16 %v370
    %v459 = vunpack.c.l.s8.bf16 %v371
    %v460 = vunpack.c.h.s8.bf16 %v370
    %v461 = vunpack.c.h.s8.bf16 %v371
    %v462 = vunpack.c.l.s8.bf16 %v372
    %v463 = vunpack.c.l.s8.bf16 %v373
    %v464 = vunpack.c.h.s8.bf16 %v372
    %v465 = vunpack.c.h.s8.bf16 %v373
    %v466 = vunpack.c.l.s8.bf16 %v374
    %v467 = vunpack.c.l.s8.bf16 %v375
    %v468 = vunpack.c.h.s8.bf16 %v374
    %v469 = vunpack.c.h.s8.bf16 %v375
    %v470 = vunpack.c.l.s8.bf16 %v376
    %v471 = vunpack.c.l.s8.bf16 %v377
    %v472 = vunpack.c.h.s8.bf16 %v376
    %v473 = vunpack.c.h.s8.bf16 %v377
    %v474 = vunpack.c.l.s8.bf16 %v378
    %v475 = vunpack.c.l.s8.bf16 %v379
    %v476 = vunpack.c.h.s8.bf16 %v378
    %v477 = vunpack.c.h.s8.bf16 %v379
    %v478 = vunpack.c.l.s8.bf16 %v380
    %v479 = vunpack.c.l.s8.bf16 %v381
    %v480 = vunpack.c.h.s8.bf16 %v380
    %v481 = vunpack.c.h.s8.bf16 %v381
    %v482 = vunpack.c.l.s8.bf16 %v382
    %v483 = vunpack.c.l.s8.bf16 %v383
    %v484 = vunpack.c.h.s8.bf16 %v382
    %v485 = vunpack.c.h.s8.bf16 %v383
    %v486 = vunpack.c.l.s8.bf16 %v384
    %v487 = vunpack.c.l.s8.bf16 %v385
    %v488 = vunpack.c.h.s8.bf16 %v384
    %v489 = vunpack.c.h.s8.bf16 %v385
    %v490 = vunpack.c.l.s8.bf16 %v386
    %v491 = vunpack.c.l.s8.bf16 %v387
    %v492 = vunpack.c.h.s8.bf16 %v386
    %v493 = vunpack.c.h.s8.bf16 %v387
    %v494 = vunpack.c.l.s8.bf16 %v388
    %v495 = vunpack.c.l.s8.bf16 %v389
    %v496 = vunpack.c.h.s8.bf16 %v388
    %v497 = vunpack.c.h.s8.bf16 %v389
    %v498 = vunpack.c.l.s8.bf16 %v390
    %v499 = vunpack.c.l.s8.bf16 %v391
    %v500 = vunpack.c.h.s8.bf16 %v390
    %v501 = vunpack.c.h.s8.bf16 %v391
    %v502 = vunpack.c.l.s8.bf16 %v392
    %v503 = vunpack.c.l.s8.bf16 %v393
    %v504 = vunpack.c.h.s8.bf16 %v392
    %v505 = vunpack.c.h.s8.bf16 %v393
    %506 = vmatprep.subr.bf16.mxu0 %v409
    %507 = vmatpush1.bf16.msra.mxu0 %v408
    %508 = vmatprep.subr.bf16.mxu0 %v407
    %509 = vmatpush1.bf16.msra.mxu0 %v406
    %510 = vmatprep.subr.bf16.mxu0 %v405
    %511 = vmatpush1.bf16.msra.mxu0 %v404
    %512 = vmatprep.subr.bf16.mxu0 %v403
    %513 = vmatpush1.bf16.msra.mxu0 %v402
    %514 = vmatprep.subr.bf16.mxu0 %v401
    %515 = vmatpush1.bf16.msra.mxu0 %v400
    %516 = vmatprep.subr.bf16.mxu0 %v399
    %517 = vmatpush1.bf16.msra.mxu0 %v398
    %518 = vmatprep.subr.bf16.mxu0 %v397
    %519 = vmatpush1.bf16.msra.mxu0 %v396
    %520 = vmatprep.subr.bf16.mxu0 %v395
    %521 = vmatpush1.bf16.msra.mxu0 %v394
    %522 = vmatprep.subr.bf16.mxu0 %v425
    %523 = vmatpush2.bf16.msra.mxu0 %v424
    %524 = vmatprep.subr.bf16.mxu0 %v423
    %525 = vmatpush2.bf16.msra.mxu0 %v422
    %526 = vmatprep.subr.bf16.mxu0 %v421
    %527 = vmatpush2.bf16.msra.mxu0 %v420
    %528 = vmatprep.subr.bf16.mxu0 %v419
    %529 = vmatpush2.bf16.msra.mxu0 %v418
    %530 = vmatprep.subr.bf16.mxu0 %v417
    %531 = vmatpush2.bf16.msra.mxu0 %v416
    %532 = vmatprep.subr.bf16.mxu0 %v415
    %533 = vmatpush2.bf16.msra.mxu0 %v414
    %534 = vmatprep.subr.bf16.mxu0 %v413
    %535 = vmatpush2.bf16.msra.mxu0 %v412
    %536 = vmatprep.subr.bf16.mxu0 %v411
    %537 = vmatpush2.bf16.msra.mxu0 %v410
    %538 = vmatprep.mubr.bf16.mxu0 %v325
    %539 = vmatmul.mubr.bf16.gmra.mxu0 %v324
    %v540 = vpop.f32.mrf.mxu0
    %v541 = vadd.f32 0.0, %v540
    %v542 = vpop.f32.mrf.mxu0
    %v543 = vadd.f32 0.0, %v542
    %v544 = vpop.f32.mrf.mxu0
    %v545 = vadd.f32 0.0, %v544
    %v546 = vpop.f32.mrf.mxu0
    %v547 = vadd.f32 0.0, %v546
    %548 = vmatprep.mubr.bf16.mxu0 %v332
    %549 = vmatmul.mubr.bf16.gmra.mxu0 %v331
    %v550 = vpop.f32.mrf.mxu0
    %v551 = vadd.f32 0.0, %v550
    %v552 = vpop.f32.mrf.mxu0
    %v553 = vadd.f32 0.0, %v552
    %v554 = vpop.f32.mrf.mxu0
    %v555 = vadd.f32 0.0, %v554
    %v556 = vpop.f32.mrf.mxu0
    %v557 = vadd.f32 0.0, %v556
    %558 = vdwg.mxu0
    %559 = vmatprep.subr.bf16.mxu0 %v441
    %560 = vmatpush1.bf16.msra.mxu0 %v440
    %561 = vmatprep.subr.bf16.mxu0 %v439
    %562 = vmatpush1.bf16.msra.mxu0 %v438
    %563 = vmatprep.subr.bf16.mxu0 %v437
    %564 = vmatpush1.bf16.msra.mxu0 %v436
    %565 = vmatprep.subr.bf16.mxu0 %v435
    %566 = vmatpush1.bf16.msra.mxu0 %v434
    %567 = vmatprep.subr.bf16.mxu0 %v433
    %568 = vmatpush1.bf16.msra.mxu0 %v432
    %569 = vmatprep.subr.bf16.mxu0 %v431
    %570 = vmatpush1.bf16.msra.mxu0 %v430
    %571 = vmatprep.subr.bf16.mxu0 %v429
    %572 = vmatpush1.bf16.msra.mxu0 %v428
    %573 = vmatprep.subr.bf16.mxu0 %v427
    %574 = vmatpush1.bf16.msra.mxu0 %v426
    %575 = vmatprep.subr.bf16.mxu0 %v457
    %576 = vmatpush2.bf16.msra.mxu0 %v456
    %577 = vmatprep.subr.bf16.mxu0 %v455
    %578 = vmatpush2.bf16.msra.mxu0 %v454
    %579 = vmatprep.subr.bf16.mxu0 %v453
    %580 = vmatpush2.bf16.msra.mxu0 %v452
    %581 = vmatprep.subr.bf16.mxu0 %v451
    %582 = vmatpush2.bf16.msra.mxu0 %v450
    %583 = vmatprep.subr.bf16.mxu0 %v449
    %584 = vmatpush2.bf16.msra.mxu0 %v448
    %585 = vmatprep.subr.bf16.mxu0 %v447
    %586 = vmatpush2.bf16.msra.mxu0 %v446
    %587 = vmatprep.subr.bf16.mxu0 %v445
    %588 = vmatpush2.bf16.msra.mxu0 %v444
    %589 = vmatprep.subr.bf16.mxu0 %v443
    %590 = vmatpush2.bf16.msra.mxu0 %v442
    %591 = vmatprep.mubr.bf16.mxu0 %v327
    %592 = vmatmul.mubr.bf16.gmra.mxu0 %v326
    %v593 = vpop.f32.mrf.mxu0
    %v594 = vadd.f32 %v541, %v593
    %v595 = vpop.f32.mrf.mxu0
    %v596 = vadd.f32 %v543, %v595
    %v597 = vpop.f32.mrf.mxu0
    %v598 = vadd.f32 %v545, %v597
    %v599 = vpop.f32.mrf.mxu0
    %v600 = vadd.f32 %v547, %v599
    %601 = vmatprep.mubr.bf16.mxu0 %v334
    %602 = vmatmul.mubr.bf16.gmra.mxu0 %v333
    %v603 = vpop.f32.mrf.mxu0
    %v604 = vadd.f32 %v551, %v603
    %v605 = vpop.f32.mrf.mxu0
    %v606 = vadd.f32 %v553, %v605
    %v607 = vpop.f32.mrf.mxu0
    %v608 = vadd.f32 %v555, %v607
    %v609 = vpop.f32.mrf.mxu0
    %v610 = vadd.f32 %v557, %v609
    %611 = vdwg.mxu0
    %612 = vmatprep.subr.bf16.mxu0 %v473
    %613 = vmatpush1.bf16.msra.mxu0 %v472
    %614 = vmatprep.subr.bf16.mxu0 %v471
    %615 = vmatpush1.bf16.msra.mxu0 %v470
    %616 = vmatprep.subr.bf16.mxu0 %v469
    %617 = vmatpush1.bf16.msra.mxu0 %v468
    %618 = vmatprep.subr.bf16.mxu0 %v467
    %619 = vmatpush1.bf16.msra.mxu0 %v466
    %620 = vmatprep.subr.bf16.mxu0 %v465
    %621 = vmatpush1.bf16.msra.mxu0 %v464
    %622 = vmatprep.subr.bf16.mxu0 %v463
    %623 = vmatpush1.bf16.msra.mxu0 %v462
    %624 = vmatprep.subr.bf16.mxu0 %v461
    %625 = vmatpush1.bf16.msra.mxu0 %v460
    %626 = vmatprep.subr.bf16.mxu0 %v459
    %627 = vmatpush1.bf16.msra.mxu0 %v458
    %628 = vmatprep.subr.bf16.mxu0 %v489
    %629 = vmatpush2.bf16.msra.mxu0 %v488
    %630 = vmatprep.subr.bf16.mxu0 %v487
    %631 = vmatpush2.bf16.msra.mxu0 %v486
    %632 = vmatprep.subr.bf16.mxu0 %v485
    %633 = vmatpush2.bf16.msra.mxu0 %v484
    %634 = vmatprep.subr.bf16.mxu0 %v483
    %635 = vmatpush2.bf16.msra.mxu0 %v482
    %636 = vmatprep.subr.bf16.mxu0 %v481
    %637 = vmatpush2.bf16.msra.mxu0 %v480
    %638 = vmatprep.subr.bf16.mxu0 %v479
    %639 = vmatpush2.bf16.msra.mxu0 %v478
    %640 = vmatprep.subr.bf16.mxu0 %v477
    %641 = vmatpush2.bf16.msra.mxu0 %v476
    %642 = vmatprep.subr.bf16.mxu0 %v475
    %643 = vmatpush2.bf16.msra.mxu0 %v474
    %644 = vmatprep.mubr.bf16.mxu0 %v329
    %645 = vmatmul.mubr.bf16.gmra.mxu0 %v328
    %v646 = vpop.f32.mrf.mxu0
    %v647 = vadd.f32 %v594, %v646
    %v648 = vpop.f32.mrf.mxu0
    %v649 = vadd.f32 %v596, %v648
    %v650 = vpop.f32.mrf.mxu0
    %v651 = vadd.f32 %v598, %v650
    %v652 = vpop.f32.mrf.mxu0
    %v653 = vadd.f32 %v600, %v652
    %654 = vmatprep.mubr.bf16.mxu0 %v336
    %655 = vmatmul.mubr.bf16.gmra.mxu0 %v335
    %v656 = vpop.f32.mrf.mxu0
    %v657 = vadd.f32 %v604, %v656
    %v658 = vpop.f32.mrf.mxu0
    %v659 = vadd.f32 %v606, %v658
    %v660 = vpop.f32.mrf.mxu0
    %v661 = vadd.f32 %v608, %v660
    %v662 = vpop.f32.mrf.mxu0
    %v663 = vadd.f32 %v610, %v662
    %664 = vdwg.mxu0
    %665 = vmatprep.subr.bf16.mxu0 %v505
    %666 = vmatpush1.bf16.msra.mxu0 %v504
    %667 = vmatprep.subr.bf16.mxu0 %v503
    %668 = vmatpush1.bf16.msra.mxu0 %v502
    %669 = vmatprep.subr.bf16.mxu0 %v501
    %670 = vmatpush1.bf16.msra.mxu0 %v500
    %671 = vmatprep.subr.bf16.mxu0 %v499
    %672 = vmatpush1.bf16.msra.mxu0 %v498
    %673 = vmatprep.subr.bf16.mxu0 %v497
    %674 = vmatpush1.bf16.msra.mxu0 %v496
    %675 = vmatprep.subr.bf16.mxu0 %v495
    %676 = vmatpush1.bf16.msra.mxu0 %v494
    %677 = vmatprep.subr.bf16.mxu0 %v493
    %678 = vmatpush1.bf16.msra.mxu0 %v492
    %679 = vmatprep.subr.bf16.mxu0 %v491
    %680 = vmatpush1.bf16.msra.mxu0 %v490
    %681 = vmatprep.subr.bf16.mxu0 0
    %682 = vmatpush2.bf16.msra.mxu0 0
    %683 = vmatprep.subr.bf16.mxu0 0
    %684 = vmatpush2.bf16.msra.mxu0 0
    %685 = vmatprep.subr.bf16.mxu0 0
    %686 = vmatpush2.bf16.msra.mxu0 0
    %687 = vmatprep.subr.bf16.mxu0 0
    %688 = vmatpush2.bf16.msra.mxu0 0
    %689 = vmatprep.subr.bf16.mxu0 0
    %690 = vmatpush2.bf16.msra.mxu0 0
    %691 = vmatprep.subr.bf16.mxu0 0
    %692 = vmatpush2.bf16.msra.mxu0 0
    %693 = vmatprep.subr.bf16.mxu0 0
    %694 = vmatpush2.bf16.msra.mxu0 0
    %695 = vmatprep.subr.bf16.mxu0 0
    %696 = vmatpush2.bf16.msra.mxu0 0
    %697 = vmatprep.mubr.bf16.mxu0 0
    %698 = vmatmul.mubr.bf16.gmra.mxu0 %v330
    %v699 = vpop.f32.mrf.mxu0
    %v700 = vadd.f32 %v647, %v699
    %v701 = vpop.f32.mrf.mxu0
    %v702 = vadd.f32 %v649, %v701
    %v703 = vpop.f32.mrf.mxu0
    %v704 = vadd.f32 %v651, %v703
    %v705 = vpop.f32.mrf.mxu0
    %v706 = vadd.f32 %v653, %v705
    %707 = vmatprep.mubr.bf16.mxu0 0
    %708 = vmatmul.mubr.bf16.gmra.mxu0 %v337
    %v709 = vpop.f32.mrf.mxu0
    %v710 = vadd.f32 %v657, %v709
    %v711 = vpop.f32.mrf.mxu0
    %v712 = vadd.f32 %v659, %v711
    %v713 = vpop.f32.mrf.mxu0
    %v714 = vadd.f32 %v661, %v713
    %v715 = vpop.f32.mrf.mxu0
    %v716 = vadd.f32 %v663, %v715
    %717 = vdwg.mxu0
    %s718 = sld [smem:[#allocation11]]
    %v719 = vstv %s718
    %v720 = vmul.f32 %v211, %v719
    %v721 = vmul.f32 %v700, %v720
    %v722 = vmul.f32 %v702, %v720
    %v723 = vmul.f32 %v704, %v720
    %v724 = vmul.f32 %v706, %v720
    %v725 = vmul.f32 %v710, %v720
    %v726 = vmul.f32 %v712, %v720
    %v727 = vmul.f32 %v714, %v720
    %v728 = vmul.f32 %v716, %v720
    %v729 = vld [vmem:[%s2] sm:$0x3]
    %v731 = vlaneseq
    %v732 = vshrl.u32 %v731, 7
    %v733 = vsub.s32 0, %v732
    %v734 = vrot.slane %v729, %v733
    %v735 = vlaneseq
    %v736 = vshrl.u32 %v735, 7
    %v737 = vsub.s32 1, %v736
    %v738 = vrot.slane %v729, %v737
    %v741 = vadd.f32 %v721, %v734
    %v742 = vadd.f32 %v722, %v738
    %v743 = vadd.f32 %v723, %v734
    %v744 = vadd.f32 %v724, %v738
    %v745 = vadd.f32 %v725, %v734
    %v746 = vadd.f32 %v726, %v738
    %v747 = vadd.f32 %v727, %v734
    %v748 = vadd.f32 %v728, %v738
    %v749 = vmax.f32 %v741, 0.0
    %v750 = vmax.f32 %v742, 0.0
    %v751 = vmax.f32 %v743, 0.0
    %v752 = vmax.f32 %v744, 0.0
    %v753 = vmax.f32 %v745, 0.0
    %v754 = vmax.f32 %v746, 0.0
    %v755 = vmax.f32 %v747, 0.0
    %v756 = vmax.f32 %v748, 0.0
    %v757 = vmax.f32 %v749, %v753
    %v758 = vmax.f32 %v750, %v754
    %v759 = vmax.f32 %v751, %v755
    %v760 = vmax.f32 %v752, %v756
    %v761 = vmax.f32 %v757, %v758
    %v762 = vmax.f32 %v759, %v760
    %v763 = vmax.f32 %v761, %v762
    %764 = vmax.xlane.f32.xlu0 %v763
    %v765 = vpop.xlane.xlu0 %764
    %v766 = vrot.slane %v765, 4
    %v767 = vmax.f32 %v765, %v766
    %v768 = vrot.slane %v767, 2
    %v769 = vmax.f32 %v767, %v768
    %v770 = vrot.slane %v769, 1
    %v771 = vmax.f32 %v769, %v770
    %s772 = vtos %v771
    %v773 = vstv %s772
    %v774 = vmax.f32 %v773, 1e-08
    %v775 = vrcp.pop %v774
    %v776 = vmul.f32 7.0, %v775
    %v777 = vmul.f32 %v774, 0.14285715
    %v778 = vmul.f32 %v749, %v776
    %v779 = vmul.f32 %v750, %v776
    %v780 = vmul.f32 %v751, %v776
    %v781 = vmul.f32 %v752, %v776
    %v782 = vmul.f32 %v753, %v776
    %v783 = vmul.f32 %v754, %v776
    %v784 = vmul.f32 %v755, %v776
    %v785 = vmul.f32 %v756, %v776
    %v786 = vround.ne.pseudo %v778
    %v787 = vround.ne.pseudo %v779
    %v788 = vround.ne.pseudo %v780
    %v789 = vround.ne.pseudo %v781
    %v790 = vround.ne.pseudo %v782
    %v791 = vround.ne.pseudo %v783
    %v792 = vround.ne.pseudo %v784
    %v793 = vround.ne.pseudo %v785
    %v794 = vmax.f32 %v786, 0.0
    %v795 = vmax.f32 %v787, 0.0
    %v796 = vmax.f32 %v788, 0.0
    %v797 = vmax.f32 %v789, 0.0
    %v798 = vmax.f32 %v790, 0.0
    %v799 = vmax.f32 %v791, 0.0
    %v800 = vmax.f32 %v792, 0.0
    %v801 = vmax.f32 %v793, 0.0
    %v802 = vmin.f32 %v794, 7.0
    %v803 = vmin.f32 %v795, 7.0
    %v804 = vmin.f32 %v796, 7.0
    %v805 = vmin.f32 %v797, 7.0
    %v806 = vmin.f32 %v798, 7.0
    %v807 = vmin.f32 %v799, 7.0
    %v808 = vmin.f32 %v800, 7.0
    %v809 = vmin.f32 %v801, 7.0
    %v810 = vpack.c.bf16 %v804, %v802
    %v811 = vpack.c.bf16 %v805, %v803
    %v812 = vpack.c.bf16 %v808, %v806
    %v813 = vpack.c.bf16 %v809, %v807
    %v814 = vld [vmem:[#allocation8] sm:$0xff]
    %v815 = vld [vmem:[#allocation8 + $0x8] sm:$0xff]
    %v816 = vld [vmem:[#allocation8 + $0x10] sm:$0xff]
    %v817 = vld [vmem:[#allocation8 + $0x18] sm:$0xff]
    %v818 = vld [vmem:[#allocation8 + $0x20] sm:$0xff]
    %v819 = vld [vmem:[#allocation8 + $0x28] sm:$0xff]
    %v820 = vld [vmem:[#allocation8 + $0x30] sm:$0xff]
    %v821 = vld [vmem:[#allocation8 + $0x38] sm:$0xff]
    %v822 = vld [vmem:[#allocation8 + $0x40] sm:$0xff]
    %v823 = vld [vmem:[#allocation8 + $0x48] sm:$0xff]
    %v824 = vld [vmem:[#allocation8 + $0x50] sm:$0xff]
    %v825 = vld [vmem:[#allocation8 + $0x58] sm:$0xff]
    %v826 = vld [vmem:[#allocation8 + $0x60] sm:$0xff]
    %v827 = vld [vmem:[#allocation8 + $0x68] sm:$0xff]
    %v828 = vld [vmem:[#allocation8 + $0x70] sm:$0xff]
    %v829 = vld [vmem:[#allocation8 + $0x78] sm:$0xff]
    %v830 = vunpack.c.l.s8.bf16 %v814
    %v831 = vunpack.c.l.s8.bf16 %v815
    %v832 = vunpack.c.h.s8.bf16 %v814
    %v833 = vunpack.c.h.s8.bf16 %v815
    %v834 = vunpack.c.l.s8.bf16 %v816
    %v835 = vunpack.c.l.s8.bf16 %v817
    %v836 = vunpack.c.h.s8.bf16 %v816
    %v837 = vunpack.c.h.s8.bf16 %v817
    %v838 = vunpack.c.l.s8.bf16 %v818
    %v839 = vunpack.c.l.s8.bf16 %v819
    %v840 = vunpack.c.h.s8.bf16 %v818
    %v841 = vunpack.c.h.s8.bf16 %v819
    %v842 = vunpack.c.l.s8.bf16 %v820
    %v843 = vunpack.c.l.s8.bf16 %v821
    %v844 = vunpack.c.h.s8.bf16 %v820
    %v845 = vunpack.c.h.s8.bf16 %v821
    %v846 = vunpack.c.l.s8.bf16 %v822
    %v847 = vunpack.c.l.s8.bf16 %v823
    %v848 = vunpack.c.h.s8.bf16 %v822
    %v849 = vunpack.c.h.s8.bf16 %v823
    %v850 = vunpack.c.l.s8.bf16 %v824
    %v851 = vunpack.c.l.s8.bf16 %v825
    %v852 = vunpack.c.h.s8.bf16 %v824
    %v853 = vunpack.c.h.s8.bf16 %v825
    %v854 = vunpack.c.l.s8.bf16 %v826
    %v855 = vunpack.c.l.s8.bf16 %v827
    %v856 = vunpack.c.h.s8.bf16 %v826
    %v857 = vunpack.c.h.s8.bf16 %v827
    %v858 = vunpack.c.l.s8.bf16 %v828
    %v859 = vunpack.c.l.s8.bf16 %v829
    %v860 = vunpack.c.h.s8.bf16 %v828
    %v861 = vunpack.c.h.s8.bf16 %v829
    %862 = vmatprep.subr.bf16.mxu0 %v845
    %863 = vmatpush1.bf16.msra.mxu0 %v844
    %864 = vmatprep.subr.bf16.mxu0 %v843
    %865 = vmatpush1.bf16.msra.mxu0 %v842
    %866 = vmatprep.subr.bf16.mxu0 %v841
    %867 = vmatpush1.bf16.msra.mxu0 %v840
    %868 = vmatprep.subr.bf16.mxu0 %v839
    %869 = vmatpush1.bf16.msra.mxu0 %v838
    %870 = vmatprep.subr.bf16.mxu0 %v837
    %871 = vmatpush1.bf16.msra.mxu0 %v836
    %872 = vmatprep.subr.bf16.mxu0 %v835
    %873 = vmatpush1.bf16.msra.mxu0 %v834
    %874 = vmatprep.subr.bf16.mxu0 %v833
    %875 = vmatpush1.bf16.msra.mxu0 %v832
    %876 = vmatprep.subr.bf16.mxu0 %v831
    %877 = vmatpush1.bf16.msra.mxu0 %v830
    %878 = vmatprep.subr.bf16.mxu0 %v861
    %879 = vmatpush2.bf16.msra.mxu0 %v860
    %880 = vmatprep.subr.bf16.mxu0 %v859
    %881 = vmatpush2.bf16.msra.mxu0 %v858
    %882 = vmatprep.subr.bf16.mxu0 %v857
    %883 = vmatpush2.bf16.msra.mxu0 %v856
    %884 = vmatprep.subr.bf16.mxu0 %v855
    %885 = vmatpush2.bf16.msra.mxu0 %v854
    %886 = vmatprep.subr.bf16.mxu0 %v853
    %887 = vmatpush2.bf16.msra.mxu0 %v852
    %888 = vmatprep.subr.bf16.mxu0 %v851
    %889 = vmatpush2.bf16.msra.mxu0 %v850
    %890 = vmatprep.subr.bf16.mxu0 %v849
    %891 = vmatpush2.bf16.msra.mxu0 %v848
    %892 = vmatprep.subr.bf16.mxu0 %v847
    %893 = vmatpush2.bf16.msra.mxu0 %v846
    %894 = vmatprep.mubr.bf16.mxu0 %v811
    %895 = vmatmul.mubr.bf16.gmra.mxu0 %v810
    %v896 = vpop.f32.mrf.mxu0
    %v897 = vadd.f32 0.0, %v896
    %v898 = vpop.f32.mrf.mxu0
    %v899 = vadd.f32 0.0, %v898
    %v900 = vpop.f32.mrf.mxu0
    %v901 = vadd.f32 0.0, %v900
    %v902 = vpop.f32.mrf.mxu0
    %v903 = vadd.f32 0.0, %v902
    %904 = vmatprep.mubr.bf16.mxu0 %v813
    %905 = vmatmul.mubr.bf16.gmra.mxu0 %v812
    %v906 = vpop.f32.mrf.mxu0
    %v907 = vadd.f32 0.0, %v906
    %v908 = vpop.f32.mrf.mxu0
    %v909 = vadd.f32 0.0, %v908
    %v910 = vpop.f32.mrf.mxu0
    %v911 = vadd.f32 0.0, %v910
    %v912 = vpop.f32.mrf.mxu0
    %v913 = vadd.f32 0.0, %v912
    %914 = vdwg.mxu0
    %s915 = sld [smem:[#allocation11 + $0x1]]
    %v916 = vstv %s915
    %v917 = vmul.f32 %v777, %v916
    %v918 = vmul.f32 %v897, %v917
    %v919 = vmul.f32 %v899, %v917
    %v920 = vmul.f32 %v901, %v917
    %v921 = vmul.f32 %v903, %v917
    %v922 = vmul.f32 %v907, %v917
    %v923 = vmul.f32 %v909, %v917
    %v924 = vmul.f32 %v911, %v917
    %v925 = vmul.f32 %v913, %v917
    %v926 = vld [vmem:[%s4] sm:$0x3]
    %v928 = vlaneseq
    %v929 = vshrl.u32 %v928, 7
    %v930 = vsub.s32 0, %v929
    %v931 = vrot.slane %v926, %v930
    %v932 = vlaneseq
    %v933 = vshrl.u32 %v932, 7
    %v934 = vsub.s32 1, %v933
    %v935 = vrot.slane %v926, %v934
    %v938 = vadd.f32 %v918, %v931
    %v939 = vadd.f32 %v919, %v935
    %v940 = vadd.f32 %v920, %v931
    %v941 = vadd.f32 %v921, %v935
    %v942 = vadd.f32 %v922, %v931
    %v943 = vadd.f32 %v923, %v935
    %v944 = vadd.f32 %v924, %v931
    %v945 = vadd.f32 %v925, %v935
    %v946 = vmax.f32 %v938, 0.0
    %v947 = vmax.f32 %v939, 0.0
    %v948 = vmax.f32 %v940, 0.0
    %v949 = vmax.f32 %v941, 0.0
    %v950 = vmax.f32 %v942, 0.0
    %v951 = vmax.f32 %v943, 0.0
    %v952 = vmax.f32 %v944, 0.0
    %v953 = vmax.f32 %v945, 0.0
    %v954 = vmax.f32 %v946, %v950
    %v955 = vmax.f32 %v947, %v951
    %v956 = vmax.f32 %v948, %v952
    %v957 = vmax.f32 %v949, %v953
    %v958 = vmax.f32 %v954, %v955
    %v959 = vmax.f32 %v956, %v957
    %v960 = vmax.f32 %v958, %v959
    %961 = vmax.xlane.f32.xlu0 %v960
    %v962 = vpop.xlane.xlu0 %961
    %v963 = vrot.slane %v962, 4
    %v964 = vmax.f32 %v962, %v963
    %v965 = vrot.slane %v964, 2
    %v966 = vmax.f32 %v964, %v965
    %v967 = vrot.slane %v966, 1
    %v968 = vmax.f32 %v966, %v967
    %s969 = vtos %v968
    %v970 = vstv %s969
    %v971 = vmax.f32 %v970, 1e-08
    %v972 = vrcp.pop %v971
    %v973 = vmul.f32 7.0, %v972
    %v974 = vmul.f32 %v971, 0.14285715
    %v975 = vmul.f32 %v946, %v973
    %v976 = vmul.f32 %v947, %v973
    %v977 = vmul.f32 %v948, %v973
    %v978 = vmul.f32 %v949, %v973
    %v979 = vmul.f32 %v950, %v973
    %v980 = vmul.f32 %v951, %v973
    %v981 = vmul.f32 %v952, %v973
    %v982 = vmul.f32 %v953, %v973
    %v983 = vround.ne.pseudo %v975
    %v984 = vround.ne.pseudo %v976
    %v985 = vround.ne.pseudo %v977
    %v986 = vround.ne.pseudo %v978
    %v987 = vround.ne.pseudo %v979
    %v988 = vround.ne.pseudo %v980
    %v989 = vround.ne.pseudo %v981
    %v990 = vround.ne.pseudo %v982
    %v991 = vmax.f32 %v983, 0.0
    %v992 = vmax.f32 %v984, 0.0
    %v993 = vmax.f32 %v985, 0.0
    %v994 = vmax.f32 %v986, 0.0
    %v995 = vmax.f32 %v987, 0.0
    %v996 = vmax.f32 %v988, 0.0
    %v997 = vmax.f32 %v989, 0.0
    %v998 = vmax.f32 %v990, 0.0
    %v999 = vmin.f32 %v991, 7.0
    %v1000 = vmin.f32 %v992, 7.0
    %v1001 = vmin.f32 %v993, 7.0
    %v1002 = vmin.f32 %v994, 7.0
    %v1003 = vmin.f32 %v995, 7.0
    %v1004 = vmin.f32 %v996, 7.0
    %v1005 = vmin.f32 %v997, 7.0
    %v1006 = vmin.f32 %v998, 7.0
    %v1007 = vpack.c.bf16 %v1001, %v999
    %v1008 = vpack.c.bf16 %v1002, %v1000
    %v1009 = vpack.c.bf16 %v1005, %v1003
    %v1010 = vpack.c.bf16 %v1006, %v1004
    %v1011 = vld [vmem:[#allocation9] sm:$0xff]
    %v1012 = vld [vmem:[#allocation9 + $0x8] sm:$0xff]
    %v1013 = vld [vmem:[#allocation9 + $0x10] sm:$0xff]
    %v1014 = vld [vmem:[#allocation9 + $0x18] sm:$0xff]
    %v1015 = vld [vmem:[#allocation9 + $0x20] sm:$0xff]
    %v1016 = vld [vmem:[#allocation9 + $0x28] sm:$0xff]
    %v1017 = vld [vmem:[#allocation9 + $0x30] sm:$0xff]
    %v1018 = vld [vmem:[#allocation9 + $0x38] sm:$0xff]
    %v1019 = vunpack.c.l.s8.bf16 %v1011
    %v1020 = vunpack.c.h.s8.bf16 %v1011
    %v1021 = vunpack.c.l.s8.bf16 %v1012
    %v1022 = vunpack.c.h.s8.bf16 %v1012
    %v1023 = vunpack.c.l.s8.bf16 %v1013
    %v1024 = vunpack.c.h.s8.bf16 %v1013
    %v1025 = vunpack.c.l.s8.bf16 %v1014
    %v1026 = vunpack.c.h.s8.bf16 %v1014
    %v1027 = vunpack.c.l.s8.bf16 %v1015
    %v1028 = vunpack.c.h.s8.bf16 %v1015
    %v1029 = vunpack.c.l.s8.bf16 %v1016
    %v1030 = vunpack.c.h.s8.bf16 %v1016
    %v1031 = vunpack.c.l.s8.bf16 %v1017
    %v1032 = vunpack.c.h.s8.bf16 %v1017
    %v1033 = vunpack.c.l.s8.bf16 %v1018
    %v1034 = vunpack.c.h.s8.bf16 %v1018
    %1035 = vmatprep.subr.bf16.mxu0 0
    %1036 = vmatpush1.bf16.msra.mxu0 %v1026
    %1037 = vmatprep.subr.bf16.mxu0 0
    %1038 = vmatpush1.bf16.msra.mxu0 %v1025
    %1039 = vmatprep.subr.bf16.mxu0 0
    %1040 = vmatpush1.bf16.msra.mxu0 %v1024
    %1041 = vmatprep.subr.bf16.mxu0 0
    %1042 = vmatpush1.bf16.msra.mxu0 %v1023
    %1043 = vmatprep.subr.bf16.mxu0 0
    %1044 = vmatpush1.bf16.msra.mxu0 %v1022
    %1045 = vmatprep.subr.bf16.mxu0 0
    %1046 = vmatpush1.bf16.msra.mxu0 %v1021
    %1047 = vmatprep.subr.bf16.mxu0 0
    %1048 = vmatpush1.bf16.msra.mxu0 %v1020
    %1049 = vmatprep.subr.bf16.mxu0 0
    %1050 = vmatpush1.bf16.msra.mxu0 %v1019
    %1051 = vmatprep.subr.bf16.mxu0 0
    %1052 = vmatpush2.bf16.msra.mxu0 %v1034
    %1053 = vmatprep.subr.bf16.mxu0 0
    %1054 = vmatpush2.bf16.msra.mxu0 %v1033
    %1055 = vmatprep.subr.bf16.mxu0 0
    %1056 = vmatpush2.bf16.msra.mxu0 %v1032
    %1057 = vmatprep.subr.bf16.mxu0 0
    %1058 = vmatpush2.bf16.msra.mxu0 %v1031
    %1059 = vmatprep.subr.bf16.mxu0 0
    %1060 = vmatpush2.bf16.msra.mxu0 %v1030
    %1061 = vmatprep.subr.bf16.mxu0 0
    %1062 = vmatpush2.bf16.msra.mxu0 %v1029
    %1063 = vmatprep.subr.bf16.mxu0 0
    %1064 = vmatpush2.bf16.msra.mxu0 %v1028
    %1065 = vmatprep.subr.bf16.mxu0 0
    %1066 = vmatpush2.bf16.msra.mxu0 %v1027
    %1067 = vmatprep.mubr.bf16.mxu0 %v1008
    %1068 = vmatmul.mubr.bf16.gmra.mxu0 %v1007
    %v1069 = vpop.f32.mrf.mxu0
    %v1070 = vadd.f32 0.0, %v1069
    %v1071 = vpop.f32.mrf.mxu0
    %v1072 = vpop.f32.mrf.mxu0
    %v1073 = vadd.f32 0.0, %v1072
    %v1074 = vpop.f32.mrf.mxu0
    %1075 = vmatprep.mubr.bf16.mxu0 %v1010
    %1076 = vmatmul.mubr.bf16.gmra.mxu0 %v1009
    %v1077 = vpop.f32.mrf.mxu0
    %v1078 = vadd.f32 0.0, %v1077
    %v1079 = vpop.f32.mrf.mxu0
    %v1080 = vpop.f32.mrf.mxu0
    %v1081 = vadd.f32 0.0, %v1080
    %v1082 = vpop.f32.mrf.mxu0
    %1083 = vdwg.mxu0
    %s1084 = sld [smem:[#allocation11 + $0x2]]
    %v1085 = vstv %s1084
    %v1086 = vmul.f32 %v974, %v1085
    %v1087 = vmul.f32 %v1070, %v1086
    %v1088 = vmul.f32 %v1073, %v1086
    %v1089 = vmul.f32 %v1078, %v1086
    %v1090 = vmul.f32 %v1081, %v1086
    %v1091 = vld [vmem:[%s6] sm:$0x1]
    %v1093 = vlaneseq
    %v1094 = vshrl.u32 %v1093, 7
    %v1095 = vsub.s32 0, %v1094
    %v1096 = vrot.slane %v1091, %v1095
    %v1098 = vadd.f32 %v1087, %v1096
    %v1099 = vadd.f32 %v1088, %v1096
    %v1100 = vadd.f32 %v1089, %v1096
    %v1101 = vadd.f32 %v1090, %v1096
    %1102 = vst [vmem:[#allocation12] sm:$0xff] %v1098
    %1103 = vst [vmem:[#allocation12 + $0x8] sm:$0xff] %v1099
    %1104 = vst [vmem:[#allocation12 + $0x10] sm:$0xff] %v1100
    %1105 = vst [vmem:[#allocation12 + $0x18] sm:$0xff] %v1101
    // Predicated region
    $region54: #{tpu_custom_call.1} parent=1 // pred_check
      _
    $region55: #{tpu_custom_call.1} parent=1 // pred_check_branch
      %1107 = sbr.rel (0) target = $region57
    $region56: #{tpu_custom_call.1} parent=1 // pred_region
      %s1109 = ssub.s32 512, 512
      %1110 = vsyncadd [#allocation4], %s1109
      %s1111 = sshll.u32 [#allocation12], 4
      %s1112 = int_to_ptr.vmem [resolvable:$true] %s1111
      %1117 = dma.vmem_to_hbm [thread:$0]  %s1112, 512, %s8, [#allocation4], 128, 128, 8
    $region57: #{tpu_custom_call.1} parent=1 // pred_fallthru
      _
    // Predicated region
    $region58: #{tpu_custom_call.1} parent=1 // pred_check
      _
    $region59: #{tpu_custom_call.1} parent=1 // pred_check_branch
      %1119 = sbr.rel (0) target = $region61
    $region60: #{tpu_custom_call.1} parent=1 // pred_region
      %1120 = dma.done [#allocation4], 512
    $region61: #{tpu_custom_call.1} parent=1 // pred_fallthru
      _
    %1121 = vsyncpa [#allocation3], 1
    %1122 = vsyncpa [#allocation7], 1
    %1123 = vsyncpa [#allocation10], 1
    %1124 = vsyncpa [#allocation4], 1
    %1125 = vsyncpa [#allocation5], 1

</llo_original>
